<compile_context>
chip_gen: v6e
topology: v6e:2x2x1
jax: 0.10.0
libtpu: 0.0.40
codegen_flags: <defaults>
</compile_context>

<pallas_src>
import jax
import jax.numpy as jnp
from jax.experimental import pallas as pl
from jax.experimental.pallas import tpu as pltpu


def _make_kernel(softmax: bool):
    def kernel(h_ref, m_ref, w_ref, b_ref, uw_ref, out_ref):
        # h_ref : (TB, S, Fin)   batch-block of the input (native dtype)
        # m_ref : (TB, S)        float mask (1 = keep, 0 = pad), lane-dense over S
        # w_ref : (Fin, Fout)    W.weight^T (native dtype)
        # b_ref : (1, 1, Fout)   W.bias (f32)
        # uw_ref: (1, 1, Fout)   uw.weight (f32)
        # out_ref: (TB, S)       attention weights (or raw similarities), lane-dense
        tb, s, fin = h_ref.shape
        fout = w_ref.shape[1]

        # u = tanh(h @ W^T + b): single MXU matmul over the flattened row block with f32
        # accumulation.  The (TB,S,Fin)->(TB*S,Fin) merge is layout-preserving (free) when
        # S % 8 == 0; otherwise Mosaic inserts a VMEM relayout copy (perf-only, no HBM cost).
        hm = h_ref[...].reshape(tb * s, fin)
        u = jnp.dot(hm, w_ref[...], preferred_element_type=jnp.float32)
        u = jnp.tanh(u.reshape(tb, s, fout) + b_ref[...])            # (TB, S, Fout) f32
        # TODO(synk): on v7x only, cast u to bf16 before tanh if the bundle shows EUP
        # binding (keep f32 on v5e: no bf16 VPU/EUP).

        # sim = uw(u): degenerate (Fout x 1) projection -> VPU multiply + XLU lane
        # reduction, producing a lane-dense (TB, S) tile (S on the 128-lane axis).
        sim = jnp.sum(u * uw_ref[...], axis=-1)                       # (TB, S) f32

        if not softmax:
            out_ref[...] = sim.astype(out_ref.dtype)
            return

        # allennlp masked_softmax (memory_efficient=False) over the sequence (lane) axis.
        m = m_ref[...].astype(jnp.float32)                            # (TB, S)
        z = sim * m
        z = z - jnp.max(z, axis=-1, keepdims=True)                    # numerically stable
        e = jnp.exp(z)
        p = e / jnp.sum(e, axis=-1, keepdims=True)                    # softmax(sim * mask)
        p = p * m
        p = p / (jnp.sum(p, axis=-1, keepdims=True) + 1e-13)
        out_ref[...] = p.astype(out_ref.dtype)

    return kernel


def _tile_plan(batch, seq, fin, fout, h_itemsize, w_itemsize, block_b=None):
    """Pick the batch-rows-per-step (TB) and a matching vmem_limit_bytes."""
    try:
        vmem_cap = int(pltpu.get_tpu_info().vmem_capacity_bytes)
    except Exception:
        vmem_cap = 64 << 20                       # assume the smallest (v7x) if unknown

    # Working-set target: ~40 MiB on 128-MiB parts (v5e/v6e), ~32 MiB on 64-MiB v7x.
    ws_budget = min(vmem_cap // 2, 40 << 20)
    weights = 2 * fin * fout * w_itemsize + 16 * fout          # W^T (2 bufs) + bias + uw
    # Per batch row: double-buffered h tile + f32 u intermediate (+ temps) + mask/out/sim.
    per_row = 2 * seq * fin * h_itemsize + 3 * seq * fout * 4 + 64 * seq

    if block_b is not None:
        tb = int(block_b)
        tb = batch if tb >= batch else max(8, (tb // 8) * 8)   # TB%8==0 unless TB==B
    else:
        avail = max(ws_budget - weights, per_row)
        tb_max = max(8, int(avail // per_row) // 8 * 8)

        # Minimum grid-step count so the h DMA pipeline has something to prefetch:
        # >=2 steps once the problem is HBM-meaningful, >=4 so both v7x TCs get >=2.
        total_h = batch * seq * fin * h_itemsize
        if total_h >= (16 << 20):
            min_steps = 4
        elif total_h >= (2 << 20):
            min_steps = 2
        else:
            min_steps = 1

        tb = min(tb_max, ((batch + 7) // 8) * 8)
        if min_steps > 1 and batch >= 8 * min_steps:
            tb = min(tb, max(8, (batch // min_steps // 8) * 8))
        tb = max(8, (tb // 8) * 8)
        if tb >= batch:
            tb = batch                                          # single full-batch block

    vmem_est = weights + tb * per_row + (4 << 20)
    vmem_limit = int(min(vmem_cap * 3 // 4, vmem_est + (16 << 20)))
    return tb, vmem_limit


def attention_in_htt(h, mask, W_weight, W_bias, uw_weight, *, softmax=True, block_b=None):
    """Pallas implementation of AttentionInHtt.forward.

    h:         (B, S, F_in)  any float dtype (streamed natively; bf16 h/W halves the
               dominant HBM traffic — accumulation is f32 either way)
    mask:      (B, S)        float/bool mask (1 = valid token); may be None
    W_weight:  (F_out, F_in)
    W_bias:    (F_out,) or None
    uw_weight: (1, F_out)
    returns:   (B, S) float32 — masked-softmax attention weights (or raw
               similarities when softmax=False).
    NOTE: the fused softmax needs a full (TB, S, F) slab per step; extremely long
    sequences may exceed VMEM.  PyTorch's `.squeeze()` degenerate cases (B==1 or S==1)
    are not emulated; the result is always (B, S).
    """
    B, S, Fin = h.shape
    Fout = W_weight.shape[0]

    if mask is None:
        mask2 = jnp.ones((B, S), dtype=jnp.float32)
    else:
        mask2 = jnp.asarray(mask).astype(jnp.float32).reshape(B, S)

    w_t = jnp.asarray(W_weight).T                                    # (Fin, Fout) native dtype
    if W_bias is None:
        b = jnp.zeros((1, 1, Fout), dtype=jnp.float32)
    else:
        b = jnp.asarray(W_bias).astype(jnp.float32).reshape(1, 1, Fout)
    uw = jnp.asarray(uw_weight).astype(jnp.float32).reshape(1, 1, Fout)

    TB, vmem_limit = _tile_plan(B, S, Fin, Fout,
                                jnp.dtype(h.dtype).itemsize,
                                jnp.dtype(w_t.dtype).itemsize,
                                block_b)
    grid = (pl.cdiv(B, TB),)                     # partial last block handled by Pallas

    out = pl.pallas_call(
        _make_kernel(bool(softmax)),
        out_shape=jax.ShapeDtypeStruct((B, S), jnp.float32),
        grid_spec=pltpu.PrefetchScalarGridSpec(
            num_scalar_prefetch=0,
            grid=grid,
            in_specs=[
                pl.BlockSpec((TB, S, Fin), lambda i: (i, 0, 0)),     # h  (streamed per step)
                pl.BlockSpec((TB, S), lambda i: (i, 0)),             # mask (lane-dense)
                pl.BlockSpec((Fin, Fout), lambda i: (0, 0)),         # W^T   (VMEM-resident)
                pl.BlockSpec((1, 1, Fout), lambda i: (0, 0, 0)),     # bias  (VMEM-resident)
                pl.BlockSpec((1, 1, Fout), lambda i: (0, 0, 0)),     # uw    (VMEM-resident)
            ],
            out_specs=pl.BlockSpec((TB, S), lambda i: (i, 0)),       # lane-dense output
        ),
        compiler_params=pltpu.CompilerParams(
            dimension_semantics=("parallel",),        # batch blocks are independent
            vmem_limit_bytes=vmem_limit,              # sized from the tile plan, chip-aware
        ),
    )(h, mask2, w_t, b, uw)

    return out


def _reference(h, mask, W_weight, W_bias, uw_weight, softmax=True):
    """Pure-JAX reference (mirrors the PyTorch module with allennlp masked_softmax)."""
    u = jnp.tanh(h @ W_weight.T + (0.0 if W_bias is None else W_bias))   # (B, S, Fout)
    sim = (u @ uw_weight.T)[..., 0]                                       # (B, S)
    if not softmax:
        return sim
    m = mask.astype(jnp.float32)
    p = jax.nn.softmax(sim * m, axis=-1) * m
    return p / (jnp.sum(p, axis=-1, keepdims=True) + 1e-13)


if __name__ == "__main__":
    # Small shapes consistent with the module: batch=2, seq=8, hidden(in)=32, hidden(out)=32.
    B, S, Fin, Fout = 2, 8, 32, 32
    key = jax.random.PRNGKey(0)
    k_h, k_w, k_b, k_uw, k_m = jax.random.split(key, 5)

    h = jax.random.normal(k_h, (B, S, Fin), dtype=jnp.float32)
    mask = (jax.random.uniform(k_m, (B, S)) > 0.25).astype(jnp.float32)
    mask = mask.at[:, 0].set(1.0)  # ensure at least one valid token per row

    W_weight = jax.random.normal(k_w, (Fout, Fin), dtype=jnp.float32) * 0.1
    W_bias = jax.random.normal(k_b, (Fout,), dtype=jnp.float32) * 0.1
    uw_weight = jax.random.normal(k_uw, (1, Fout), dtype=jnp.float32) * 0.1

    # softmax=True path (the module default).
    alpha = jax.block_until_ready(attention_in_htt(h, mask, W_weight, W_bias, uw_weight))
    alpha_ref = _reference(h, mask, W_weight, W_bias, uw_weight, softmax=True)
    assert alpha.shape == (B, S)
    assert jnp.allclose(alpha, alpha_ref, atol=1e-5), "softmax path mismatch vs reference"
    # rows sum to ~1 (every row has at least one valid token here)
    assert jnp.allclose(jnp.sum(alpha, axis=-1), 1.0, atol=1e-4)

    # softmax=False path (returns raw similarities).
    sims = jax.block_until_ready(
        attention_in_htt(h, mask, W_weight, W_bias, uw_weight, softmax=False))
    sims_ref = _reference(h, mask, W_weight, W_bias, uw_weight, softmax=False)
    assert jnp.allclose(sims, sims_ref, atol=1e-5), "similarity path mismatch vs reference"

    # Exercise the multi-step grid + non-dividing batch (B=20, block_b=8 -> grid of 3,
    # partial last block, no wrapper-side padding/copy of h).
    B2 = 20
    k_h2, k_m2 = jax.random.split(jax.random.PRNGKey(1), 2)
    h2 = jax.random.normal(k_h2, (B2, S, Fin), dtype=jnp.float32)
    mask2 = (jax.random.uniform(k_m2, (B2, S)) > 0.5).astype(jnp.float32)
    mask2 = mask2.at[:, 0].set(1.0)
    alpha2 = jax.block_until_ready(
        attention_in_htt(h2, mask2, W_weight, W_bias, uw_weight, block_b=8))
    alpha2_ref = _reference(h2, mask2, W_weight, W_bias, uw_weight, softmax=True)
    assert alpha2.shape == (B2, S)
    assert jnp.allclose(alpha2, alpha2_ref, atol=1e-5), "multi-step / partial-block mismatch"

    print("KERNEL_OK")
</pallas_src>

<mosaic_0001>
module attributes {stable_mosaic.version = 11 : i64} {
  func.func @kernel(%arg0: i32, %arg1: memref<2x8x32xf32, #tpu.memory_space<vmem>>, %arg2: memref<2x8xf32, #tpu.memory_space<vmem>>, %arg3: memref<32x32xf32, #tpu.memory_space<vmem>>, %arg4: memref<1x1x32xf32, #tpu.memory_space<vmem>>, %arg5: memref<1x1x32xf32, #tpu.memory_space<vmem>>, %arg6: memref<2x8xf32, #tpu.memory_space<vmem>>) attributes {dimension_semantics = [#tpu.dimension_semantics<parallel>], iteration_bounds = array<i64: 1>, scalar_prefetch = 0 : i64, scratch_operands = 0 : i64, tpu.core_type = #tpu.core_type<tc>, window_params = [{transform_indices = @transform_0, window_bounds = array<i64: 2, 8, 32>}, {transform_indices = @transform_1, window_bounds = array<i64: 2, 8>}, {pipeline_mode = #tpu.pipeline_mode<synchronous>, transform_indices = @transform_2, window_bounds = array<i64: 32, 32>}, {pipeline_mode = #tpu.pipeline_mode<synchronous>, transform_indices = @transform_3, window_bounds = array<i64: 1, 1, 32>}, {pipeline_mode = #tpu.pipeline_mode<synchronous>, transform_indices = @transform_4, window_bounds = array<i64: 1, 1, 32>}, {transform_indices = @transform_5, window_bounds = array<i64: 2, 8>}]} {
    %c0 = arith.constant 0 : index
    %c0_0 = arith.constant 0 : index
    %c0_1 = arith.constant 0 : index
    %0 = vector.load %arg1[%c0, %c0_0, %c0_1] : memref<2x8x32xf32, #tpu.memory_space<vmem>>, vector<2x8x32xf32>
    %1 = vector.shape_cast %0 : vector<2x8x32xf32> to vector<16x32xf32>
    %c0_2 = arith.constant 0 : index
    %c0_3 = arith.constant 0 : index
    %2 = vector.load %arg3[%c0_2, %c0_3] : memref<32x32xf32, #tpu.memory_space<vmem>>, vector<32x32xf32>
    %cst = arith.constant dense<0.000000e+00> : vector<16x32xf32>
    %3 = tpu.matmul %1, %2, %cst {dimension_numbers = #tpu.dot_dimension_numbers<[1], [0], [0], [1], [0, 0, 1, 1], [], []>} : vector<16x32xf32>, vector<32x32xf32>, vector<16x32xf32> -> vector<16x32xf32>
    %4 = vector.shape_cast %3 : vector<16x32xf32> to vector<2x8x32xf32>
    %c0_4 = arith.constant 0 : index
    %c0_5 = arith.constant 0 : index
    %c0_6 = arith.constant 0 : index
    %5 = vector.load %arg4[%c0_4, %c0_5, %c0_6] : memref<1x1x32xf32, #tpu.memory_space<vmem>>, vector<1x1x32xf32>
    %6 = vector.broadcast %5 : vector<1x1x32xf32> to vector<2x8x32xf32>
    %7 = arith.addf %4, %6 : vector<2x8x32xf32>
    %8 = math.tanh %7 : vector<2x8x32xf32>
    %c0_7 = arith.constant 0 : index
    %c0_8 = arith.constant 0 : index
    %c0_9 = arith.constant 0 : index
    %9 = vector.load %arg5[%c0_7, %c0_8, %c0_9] : memref<1x1x32xf32, #tpu.memory_space<vmem>>, vector<1x1x32xf32>
    %10 = vector.broadcast %9 : vector<1x1x32xf32> to vector<2x8x32xf32>
    %11 = arith.mulf %8, %10 : vector<2x8x32xf32>
    %cst_10 = arith.constant dense<0.000000e+00> : vector<2x8xf32>
    %12 = vector.multi_reduction <add>, %11, %cst_10 [2] : vector<2x8x32xf32> to vector<2x8xf32>
    %c0_11 = arith.constant 0 : index
    %c0_12 = arith.constant 0 : index
    %13 = vector.load %arg2[%c0_11, %c0_12] : memref<2x8xf32, #tpu.memory_space<vmem>>, vector<2x8xf32>
    %14 = arith.mulf %12, %13 : vector<2x8xf32>
    %cst_13 = arith.constant dense<0xFF800000> : vector<2xf32>
    %15 = vector.multi_reduction <maximumf>, %14, %cst_13 [1] : vector<2x8xf32> to vector<2xf32>
    %16 = vector.shape_cast %15 : vector<2xf32> to vector<2x1xf32>
    %17 = vector.broadcast %16 : vector<2x1xf32> to vector<2x8xf32>
    %18 = arith.subf %14, %17 : vector<2x8xf32>
    %19 = math.exp %18 : vector<2x8xf32>
    %cst_14 = arith.constant dense<0.000000e+00> : vector<2xf32>
    %20 = vector.multi_reduction <add>, %19, %cst_14 [1] : vector<2x8xf32> to vector<2xf32>
    %21 = vector.shape_cast %20 : vector<2xf32> to vector<2x1xf32>
    %22 = vector.broadcast %21 : vector<2x1xf32> to vector<2x8xf32>
    %23 = arith.divf %19, %22 : vector<2x8xf32>
    %24 = arith.mulf %23, %13 : vector<2x8xf32>
    %cst_15 = arith.constant dense<0.000000e+00> : vector<2xf32>
    %25 = vector.multi_reduction <add>, %24, %cst_15 [1] : vector<2x8xf32> to vector<2xf32>
    %26 = vector.shape_cast %25 : vector<2xf32> to vector<2x1xf32>
    %cst_16 = arith.constant 9.99999982E-14 : f32
    %27 = vector.broadcast %cst_16 : f32 to vector<2x1xf32>
    %28 = arith.addf %26, %27 : vector<2x1xf32>
    %29 = vector.broadcast %28 : vector<2x1xf32> to vector<2x8xf32>
    %30 = arith.divf %24, %29 : vector<2x8xf32>
    %c0_17 = arith.constant 0 : index
    %c0_18 = arith.constant 0 : index
    %31 = vector.load %arg6[%c0_17, %c0_18] : memref<2x8xf32, #tpu.memory_space<vmem>>, vector<2x8xf32>
    tpu.vector_store %arg6[%c0_17, %c0_18], %30 {strides = array<i32>} : memref<2x8xf32, #tpu.memory_space<vmem>>, vector<2x8xf32>,
    return
  }
  func.func @transform_0(%arg0: i32) -> (i32, i32, i32) {
    %c0_i32 = arith.constant 0 : i32
    %c0_i32_0 = arith.constant 0 : i32
    %c0_i32_1 = arith.constant 0 : i32
    return %arg0, %c0_i32, %c0_i32_0 : i32, i32, i32
  }
  func.func @transform_1(%arg0: i32) -> (i32, i32) {
    %c0_i32 = arith.constant 0 : i32
    %c0_i32_0 = arith.constant 0 : i32
    return %arg0, %c0_i32 : i32, i32
  }
  func.func @transform_2(%arg0: i32) -> (i32, i32) {
    %c0_i32 = arith.constant 0 : i32
    %c0_i32_0 = arith.constant 0 : i32
    %c0_i32_1 = arith.constant 0 : i32
    return %c0_i32, %c0_i32_0 : i32, i32
  }
  func.func @transform_3(%arg0: i32) -> (i32, i32, i32) {
    %c0_i32 = arith.constant 0 : i32
    %c0_i32_0 = arith.constant 0 : i32
    %c0_i32_1 = arith.constant 0 : i32
    %c0_i32_2 = arith.constant 0 : i32
    return %c0_i32, %c0_i32_0, %c0_i32_1 : i32, i32, i32
  }
  func.func @transform_4(%arg0: i32) -> (i32, i32, i32) {
    %c0_i32 = arith.constant 0 : i32
    %c0_i32_0 = arith.constant 0 : i32
    %c0_i32_1 = arith.constant 0 : i32
    %c0_i32_2 = arith.constant 0 : i32
    return %c0_i32, %c0_i32_0, %c0_i32_1 : i32, i32, i32
  }
  func.func @transform_5(%arg0: i32) -> (i32, i32) {
    %c0_i32 = arith.constant 0 : i32
    %c0_i32_0 = arith.constant 0 : i32
    return %arg0, %c0_i32 : i32, i32
  }
}

</mosaic_0001>

<llo_original>
// kernel: tpu_custom_call.1
$region0: #{tpu_custom_call.1}
  #allocation0 [shape = 'u32[]', space=smem, size = 0x4, offset = 0x4, fixed_abs, tag = 'smem constant byte address 0x4 - core index']
  #allocation1 [shape = 'u32[144,128]{1,0:T(1,128)}', space=vmem, size = 0x12000, scoped, tag = 'internal scratch']
  %s0 = inlined_call_operand.hbm [shape: f32[2,8,32], index: 0, kind: input, shape index: {}]
  %s1 = inlined_call_operand.hbm [shape: f32[2,8], index: 1, kind: input, shape index: {}]
  %s2 = inlined_call_operand.hbm [shape: f32[32,32], index: 2, kind: input, shape index: {}]
  %s3 = inlined_call_operand.vmem [shape: f32[1,1,32], index: 3, kind: input, shape index: {}]
  %s4 = inlined_call_operand.vmem [shape: f32[1,1,32], index: 4, kind: input, shape index: {}]
  %s5 = inlined_call_operand.hbm [shape: f32[2,8], index: 5, kind: output, shape index: {}]
  %s6 = sld [smem:[#allocation0]]
  $region42: #{tpu_custom_call.1} parent=0
    _
  %s8 = ssub.s32 1, %s6
  %s9 = scalar_select 0, %s8, %s6
  $region1: #{tpu_custom_call.1} parent=0
    #allocation2 [shape = 'u8[8192]{0}', space=vmem, size = 0x2000, scoped, tag = 'input window, operand 0, single buffered']
    #allocation3 [shape = 's32[1]{0}', space=sflag, size = 0x4, scoped, tag = 'scoped memory for tpu_custom_call.1']
    #allocation4 [shape = 's32[1]{0}', space=sflag, size = 0x4, scoped, tag = 'scoped memory for tpu_custom_call.1']
    #allocation5 [shape = 'u8[1024]{0}', space=vmem, size = 0x400, scoped, tag = 'input window, operand 1, single buffered']
    #allocation6 [shape = 's32[1]{0}', space=sflag, size = 0x4, scoped, tag = 'scoped memory for tpu_custom_call.1']
    #allocation7 [shape = 'u8[16384]{0}', space=vmem, size = 0x4000, scoped, tag = 'input window, operand 2, single buffered']
    #allocation8 [shape = 'u8[1024]{0}', space=vmem, size = 0x400, scoped, tag = 'output window, operand 0, single buffered']
    %10 = vsyncpa [#allocation3], 0
    %11 = vsyncpa [#allocation6], 0
    %12 = vsyncpa [#allocation4], 0
    // Predicated region
    $region2: #{tpu_custom_call.1} parent=1 // pred_check
      _
    $region3: #{tpu_custom_call.1} parent=1 // pred_check_branch
      %14 = sbr.rel (0) target = $region5
    $region4: #{tpu_custom_call.1} parent=1 // pred_region
      %s16 = ssub.s32 256, 256
      %17 = vsyncadd [#allocation3], %s16
      %s18 = sshll.u32 [#allocation2], 4
      %s19 = int_to_ptr.vmem [resolvable:$true] %s18
      %24 = dma.hbm_to_vmem [thread:$0]  %s0, 256, %s19, [#allocation3], 128, 128, 8
    $region5: #{tpu_custom_call.1} parent=1 // pred_fallthru
      _
    // Predicated region
    $region6: #{tpu_custom_call.1} parent=1 // pred_check
      _
    $region7: #{tpu_custom_call.1} parent=1 // pred_check_branch
      %26 = sbr.rel (0) target = $region9
    $region8: #{tpu_custom_call.1} parent=1 // pred_region
      %s28 = ssub.s32 32, 32
      %29 = vsyncadd [#allocation6], %s28
      %s31 = sshll.u32 [#allocation5], 4
      %s32 = int_to_ptr.vmem [resolvable:$true] %s31
      %34 = dma.hbm_to_vmem [thread:$0]  %s1, 32, %s32, [#allocation6]
    $region9: #{tpu_custom_call.1} parent=1 // pred_fallthru
      _
    // Predicated region
    $region10: #{tpu_custom_call.1} parent=1 // pred_check
      _
    $region11: #{tpu_custom_call.1} parent=1 // pred_check_branch
      %36 = sbr.rel (0) target = $region13
    $region12: #{tpu_custom_call.1} parent=1 // pred_region
      %s38 = ssub.s32 512, 512
      %39 = vsyncadd [#allocation6], %s38
      %s40 = sshll.u32 [#allocation7], 4
      %s41 = int_to_ptr.vmem [resolvable:$true] %s40
      %46 = dma.hbm_to_vmem [thread:$0]  %s2, 512, %s41, [#allocation6], 128, 128, 8
    $region13: #{tpu_custom_call.1} parent=1 // pred_fallthru
      _
    // Predicated region
    $region14: #{tpu_custom_call.1} parent=1 // pred_check
      _
    $region15: #{tpu_custom_call.1} parent=1 // pred_check_branch
      %48 = sbr.rel (0) target = $region17
    $region16: #{tpu_custom_call.1} parent=1 // pred_region
      _
    $region17: #{tpu_custom_call.1} parent=1 // pred_fallthru
      _
    // Predicated region
    $region18: #{tpu_custom_call.1} parent=1 // pred_check
      _
    $region19: #{tpu_custom_call.1} parent=1 // pred_check_branch
      %50 = sbr.rel (0) target = $region21
    $region20: #{tpu_custom_call.1} parent=1 // pred_region
      _
    $region21: #{tpu_custom_call.1} parent=1 // pred_fallthru
      _
    // Predicated region
    $region22: #{tpu_custom_call.1} parent=1 // pred_check
      _
    $region23: #{tpu_custom_call.1} parent=1 // pred_check_branch
      %52 = sbr.rel (0) target = $region25
    $region24: #{tpu_custom_call.1} parent=1 // pred_region
      %53 = dma.done [#allocation3], 256
    $region25: #{tpu_custom_call.1} parent=1 // pred_fallthru
      _
    // Predicated region
    $region26: #{tpu_custom_call.1} parent=1 // pred_check
      _
    $region27: #{tpu_custom_call.1} parent=1 // pred_check_branch
      %55 = sbr.rel (0) target = $region29
    $region28: #{tpu_custom_call.1} parent=1 // pred_region
      %56 = dma.done [#allocation6], 32
    $region29: #{tpu_custom_call.1} parent=1 // pred_fallthru
      _
    // Predicated region
    $region30: #{tpu_custom_call.1} parent=1 // pred_check
      _
    $region31: #{tpu_custom_call.1} parent=1 // pred_check_branch
      %58 = sbr.rel (0) target = $region33
    $region32: #{tpu_custom_call.1} parent=1 // pred_region
      %59 = dma.done [#allocation6], 512
    $region33: #{tpu_custom_call.1} parent=1 // pred_fallthru
      _
    %v60 = vld [vmem:[#allocation2] sm:$0xff]
    %v61 = vld [vmem:[#allocation2 + $0x8] sm:$0xff]
    %v62 = vld [vmem:[#allocation7] sm:$0xff]
    %v63 = vld [vmem:[#allocation7 + $0x8] sm:$0xff]
    %v64 = vld [vmem:[#allocation7 + $0x10] sm:$0xff]
    %v65 = vld [vmem:[#allocation7 + $0x18] sm:$0xff]
    %vm66 = vcmask 261120
    %v68 = vsel %vm66, %v60, 0
    %v71 = vsel %vm66, %v61, 0
    %73 = vmatprep.subr.mxu0 0.0
    %74 = vmatpush1.msra.mxu0 0.0
    %75 = vmatprep.subr.mxu0 0.0
    %76 = vmatpush1.msra.mxu0 0.0
    %77 = vmatprep.subr.mxu0 0.0
    %78 = vmatpush1.msra.mxu0 0.0
    %79 = vmatprep.subr.mxu0 0.0
    %80 = vmatpush1.msra.mxu0 0.0
    %81 = vmatprep.subr.mxu0 0.0
    %82 = vmatpush1.msra.mxu0 0.0
    %83 = vmatprep.subr.mxu0 0.0
    %84 = vmatpush1.msra.mxu0 0.0
    %85 = vmatprep.subr.mxu0 0.0
    %86 = vmatpush1.msra.mxu0 0.0
    %87 = vmatprep.subr.mxu0 0.0
    %88 = vmatpush1.msra.mxu0 0.0
    %89 = vmatprep.subr.mxu0 0.0
    %90 = vmatpush1.msra.mxu0 0.0
    %91 = vmatprep.subr.mxu0 0.0
    %92 = vmatpush1.msra.mxu0 0.0
    %93 = vmatprep.subr.mxu0 0.0
    %94 = vmatpush1.msra.mxu0 0.0
    %95 = vmatprep.subr.mxu0 0.0
    %96 = vmatpush1.msra.mxu0 0.0
    %97 = vmatprep.subr.mxu0 0.0
    %98 = vmatpush1.msra.mxu0 %v65
    %99 = vmatprep.subr.mxu0 0.0
    %100 = vmatpush1.msra.mxu0 %v64
    %101 = vmatprep.subr.mxu0 0.0
    %102 = vmatpush1.msra.mxu0 %v63
    %103 = vmatprep.subr.mxu0 0.0
    %104 = vmatpush1.msra.mxu0 %v62
    %105 = vmatprep.subr.mxu0 0.0
    %106 = vmatpush2.msra.mxu0 0.0
    %107 = vmatprep.subr.mxu0 0.0
    %108 = vmatpush2.msra.mxu0 0.0
    %109 = vmatprep.subr.mxu0 0.0
    %110 = vmatpush2.msra.mxu0 0.0
    %111 = vmatprep.subr.mxu0 0.0
    %112 = vmatpush2.msra.mxu0 0.0
    %113 = vmatprep.subr.mxu0 0.0
    %114 = vmatpush2.msra.mxu0 0.0
    %115 = vmatprep.subr.mxu0 0.0
    %116 = vmatpush2.msra.mxu0 0.0
    %117 = vmatprep.subr.mxu0 0.0
    %118 = vmatpush2.msra.mxu0 0.0
    %119 = vmatprep.subr.mxu0 0.0
    %120 = vmatpush2.msra.mxu0 0.0
    %121 = vmatprep.subr.mxu0 0.0
    %122 = vmatpush2.msra.mxu0 0.0
    %123 = vmatprep.subr.mxu0 0.0
    %124 = vmatpush2.msra.mxu0 0.0
    %125 = vmatprep.subr.mxu0 0.0
    %126 = vmatpush2.msra.mxu0 0.0
    %127 = vmatprep.subr.mxu0 0.0
    %128 = vmatpush2.msra.mxu0 0.0
    %129 = vmatprep.subr.mxu0 0.0
    %130 = vmatpush2.msra.mxu0 0.0
    %131 = vmatprep.subr.mxu0 0.0
    %132 = vmatpush2.msra.mxu0 0.0
    %133 = vmatprep.subr.mxu0 0.0
    %134 = vmatpush2.msra.mxu0 0.0
    %135 = vmatprep.subr.mxu0 0.0
    %136 = vmatpush2.msra.mxu0 0.0
    %137 = vmatprep.mubr.f32.mxu0 0.0
    %138 = vmatmul.mubr.f32.gmra.mxu0 %v68
    %v139 = vpop.f32.mrf.mxu0
    %v140 = vadd.f32 0.0, %v139
    %v141 = vpop.f32.mrf.mxu0
    %142 = vmatprep.mubr.f32.mxu0 0.0
    %143 = vmatmul.mubr.f32.gmra.mxu0 %v71
    %v144 = vpop.f32.mrf.mxu0
    %v145 = vadd.f32 0.0, %v144
    %v146 = vpop.f32.mrf.mxu0
    %147 = vdwg.mxu0
    %v148 = vld [vmem:[%s3] sm:$0x1]
    %v150 = vlaneseq
    %v151 = vshrl.u32 %v150, 7
    %v152 = vsub.s32 0, %v151
    %v153 = vrot.slane %v148, %v152
    %v155 = vadd.f32 %v140, %v153
    %v156 = vadd.f32 %v145, %v153
    %v157 = vtanh.pop %v155
    %v158 = vtanh.pop %v156
    %v159 = vld [vmem:[%s4] sm:$0x1]
    %v161 = vlaneseq
    %v162 = vshrl.u32 %v161, 7
    %v163 = vsub.s32 0, %v162
    %v164 = vrot.slane %v159, %v163
    %v166 = vmul.f32 %v157, %v164
    %v167 = vmul.f32 %v158, %v164
    %v168 = vsel %vm66, %v166, 0.0
    %169 = vadd.xlane.f32.xlu0 %v168
    %v170 = vpop.xlane.xlu0 %169
    %v171 = vsel %vm66, %v167, 0.0
    %172 = vadd.xlane.f32.xlu0 %v171
    %v173 = vpop.xlane.xlu0 %172
    %v174 = vld [vmem:[#allocation5] sm:$0x3]
    %v176 = vlaneseq
    %v177 = vshrl.u32 %v176, 7
    %v178 = vsub.s32 0, %v177
    %v179 = vrot.slane %v174, %v178
    %181 = vbcast.lane.b32.xlu0 %v179, 256
    %v182 = vpop.permute.xlu0 %181
    %v183 = vlaneseq
    %v184 = vshrl.u32 %v183, 7
    %v185 = vsub.s32 1, %v184
    %v186 = vrot.slane %v174, %v185
    %188 = vbcast.lane.b32.xlu0 %v186, 256
    %v189 = vpop.permute.xlu0 %188
    %v192 = vmul.f32 %v170, %v182
    %v193 = vmul.f32 %v173, %v189
    %196 = vset.pattern.permute.xlu0 0
    %197 = vperm.xlu0 %196, %v192
    %v198 = vpop.permute.xlu0 %197
    %199 = vset.pattern.permute.xlu0 0
    %200 = vperm.xlu0 %199, %v193
    %v201 = vpop.permute.xlu0 %200
    %v202 = vlaneseq
    %v203 = vand.u32 %v202, 127
    %v204 = vlaneseq
    %v205 = vshrl.u32 %v204, 7
    %v206 = vsub.s32 %v203, %v205
    %v207 = vrot.slane %v198, %v206
    %v208 = vlaneseq
    %v209 = vshrl.u32 %v208, 7
    %v210 = vsub.s32 %v203, %v209
    %v211 = vrot.slane %v201, %v210
    %vm212 = vcmask 1041409
    %v213 = vsel %vm212, %v211, %v207
    %vm215 = vcmask 58368
    %v216 = vsel %vm215, %v213, -inf
    %217 = vmax.xlane.f32.xlu0 %v216
    %v218 = vpop.xlane.xlu0 %217
    %v220 = vlaneseq
    %v221 = vshrl.u32 %v220, 7
    %v222 = vsub.s32 0, %v221
    %v223 = vrot.slane %v218, %v222
    %v224 = vlaneseq
    %v225 = vshrl.u32 %v224, 7
    %v226 = vsub.s32 1, %v225
    %v227 = vrot.slane %v218, %v226
    %v230 = vsub.f32 %v192, %v223
    %v231 = vsub.f32 %v193, %v227
    %v232 = vmul.f32 %v230, 1.442695
    %v233 = vpow.pop %v232
    %v234 = vmul.f32 %v231, 1.442695
    %v235 = vpow.pop %v234
    %238 = vset.pattern.permute.xlu0 0
    %239 = vperm.xlu0 %238, %v233
    %v240 = vpop.permute.xlu0 %239
    %241 = vset.pattern.permute.xlu0 0
    %242 = vperm.xlu0 %241, %v235
    %v243 = vpop.permute.xlu0 %242
    %v244 = vlaneseq
    %v245 = vshrl.u32 %v244, 7
    %v246 = vsub.s32 %v203, %v245
    %v247 = vrot.slane %v240, %v246
    %v248 = vlaneseq
    %v249 = vshrl.u32 %v248, 7
    %v250 = vsub.s32 %v203, %v249
    %v251 = vrot.slane %v243, %v250
    %v252 = vsel %vm212, %v251, %v247
    %v254 = vsel %vm215, %v252, 0.0
    %255 = vadd.xlane.f32.xlu0 %v254
    %v256 = vpop.xlane.xlu0 %255
    %v258 = vlaneseq
    %v259 = vshrl.u32 %v258, 7
    %v260 = vsub.s32 0, %v259
    %v261 = vrot.slane %v256, %v260
    %v262 = vlaneseq
    %v263 = vshrl.u32 %v262, 7
    %v264 = vsub.s32 1, %v263
    %v265 = vrot.slane %v256, %v264
    %v268 = vrcp.pop %v261
    %v269 = vmul.f32 %v233, %v268
    %v270 = vrcp.pop %v265
    %v271 = vmul.f32 %v235, %v270
    %v272 = vmul.f32 %v269, %v182
    %v273 = vmul.f32 %v271, %v189
    %276 = vset.pattern.permute.xlu0 0
    %277 = vperm.xlu0 %276, %v272
    %v278 = vpop.permute.xlu0 %277
    %279 = vset.pattern.permute.xlu0 0
    %280 = vperm.xlu0 %279, %v273
    %v281 = vpop.permute.xlu0 %280
    %v282 = vlaneseq
    %v283 = vshrl.u32 %v282, 7
    %v284 = vsub.s32 %v203, %v283
    %v285 = vrot.slane %v278, %v284
    %v286 = vlaneseq
    %v287 = vshrl.u32 %v286, 7
    %v288 = vsub.s32 %v203, %v287
    %v289 = vrot.slane %v281, %v288
    %v290 = vsel %vm212, %v289, %v285
    %v292 = vsel %vm215, %v290, 0.0
    %293 = vadd.xlane.f32.xlu0 %v292
    %v294 = vpop.xlane.xlu0 %293
    %v295 = vadd.f32 %v294, 1e-13
    %v297 = vlaneseq
    %v298 = vshrl.u32 %v297, 7
    %v299 = vsub.s32 0, %v298
    %v300 = vrot.slane %v295, %v299
    %v301 = vlaneseq
    %v302 = vshrl.u32 %v301, 7
    %v303 = vsub.s32 1, %v302
    %v304 = vrot.slane %v295, %v303
    %v307 = vrcp.pop %v300
    %v308 = vmul.f32 %v272, %v307
    %v309 = vrcp.pop %v304
    %v310 = vmul.f32 %v273, %v309
    %313 = vset.pattern.permute.xlu0 0
    %314 = vperm.xlu0 %313, %v308
    %v315 = vpop.permute.xlu0 %314
    %316 = vset.pattern.permute.xlu0 0
    %317 = vperm.xlu0 %316, %v310
    %v318 = vpop.permute.xlu0 %317
    %v319 = vlaneseq
    %v320 = vshrl.u32 %v319, 7
    %v321 = vsub.s32 %v203, %v320
    %v322 = vrot.slane %v315, %v321
    %v323 = vlaneseq
    %v324 = vshrl.u32 %v323, 7
    %v325 = vsub.s32 %v203, %v324
    %v326 = vrot.slane %v318, %v325
    %v327 = vsel %vm212, %v326, %v322
    %329 = vst.msk [vmem:[#allocation8] sm:$0x3] %vm215, %v327
    // Predicated region
    $region34: #{tpu_custom_call.1} parent=1 // pred_check
      _
    $region35: #{tpu_custom_call.1} parent=1 // pred_check_branch
      %331 = sbr.rel (0) target = $region37
    $region36: #{tpu_custom_call.1} parent=1 // pred_region
      %s333 = ssub.s32 32, 32
      %334 = vsyncadd [#allocation4], %s333
      %s336 = sshll.u32 [#allocation8], 4
      %s337 = int_to_ptr.vmem [resolvable:$true] %s336
      %339 = dma.vmem_to_hbm [thread:$0]  %s337, 32, %s5, [#allocation4]
    $region37: #{tpu_custom_call.1} parent=1 // pred_fallthru
      _
    // Predicated region
    $region38: #{tpu_custom_call.1} parent=1 // pred_check
      _
    $region39: #{tpu_custom_call.1} parent=1 // pred_check_branch
      %341 = sbr.rel (0) target = $region41
    $region40: #{tpu_custom_call.1} parent=1 // pred_region
      %342 = dma.done [#allocation4], 32
    $region41: #{tpu_custom_call.1} parent=1 // pred_fallthru
      _
    %343 = vsyncpa [#allocation3], 1
    %344 = vsyncpa [#allocation6], 1
    %345 = vsyncpa [#allocation4], 1

</llo_original>
